<compile_context>
chip_gen: v7x
topology: tpu7x:2x2x1
jax: 0.10.0
libtpu: 0.0.40
codegen_flags: <defaults>
</compile_context>

<pallas_src>
import jax
import jax.numpy as jnp
from jax.experimental import pallas as pl
from jax.experimental.pallas import tpu as pltpu


# ---------------------------------------------------------------------------
# Model configuration (small, consistent with the module's forward semantics)
# ---------------------------------------------------------------------------
HIDDEN_DIM = 32
INPUT_DIM = 5
ENCODER_LAYERS = 4          # number of (ReLU, Linear) pairs after the first Linear
DECODER_LAYERS = 4          # number of (Linear, ReLU) pairs
RES_ON = True

B = 2                       # batch
N = 8                       # set size (reduced over by sum(dim=1))

DIN_PAD = 8                 # INPUT_DIM zero-padded to the 8-sublane granule
MAX_ROW_TILE = 256          # batch elements per grid step when B is large


# ---------------------------------------------------------------------------
# Pallas forward: tiled over the batch axis
# ---------------------------------------------------------------------------
def hvnet_forward(x, params):
    """x: (B, N, INPUT_DIM) float32.  Returns (B,) float32 (post-sigmoid)."""
    ew0, eb0, ews, ebs, dws, dbs, aw, ab = params
    b, n, din = x.shape
    h_dim = ew0.shape[1]
    n_enc = ews.shape[0]
    n_mid = n_enc - 1                     # encoder hidden layers applied per-row
    n_dec = dws.shape[0]
    bf16 = jnp.bfloat16

    # ---- batch tiling -------------------------------------------------------
    # Small batch: one tile covering exactly B rows (no padding, no dead work).
    # Large batch: 256-row tiles; grid >= 2 -> "parallel" axis shards across
    # the two TensorCores on v7x.
    if b <= MAX_ROW_TILE:
        tb, grid_b = b, 1
    else:
        tb = MAX_ROW_TILE
        grid_b = pl.cdiv(b, tb)
    b_pad = grid_b * tb

    # ---- wrapper-side layout/dtype prep (cheap XLA ops, outside the kernel) --
    # Zero-pad the feature dim 5 -> 8 on both x and the first weight.
    x_p = jnp.pad(x, ((0, 0), (0, 0), (0, DIN_PAD - din)))
    if b_pad > b:
        x_p = jnp.pad(x_p, ((0, b_pad - b), (0, 0), (0, 0)))
    x_flat = x_p.reshape(b_pad * n, DIN_PAD).astype(bf16)   # (rows, DIN_PAD) bf16

    ew0_p = jnp.pad(ew0, ((0, DIN_PAD - din), (0, 0))).astype(bf16)

    # Split the encoder: the last Linear is applied after the N-sum, so its
    # bias is pre-scaled by N (sum_n (r_n @ W + b) == (sum_n r_n) @ W + N*b).
    ews_mid = ews[:-1].astype(bf16)                     # (n_mid, H, H) bf16
    ebs_mid = ebs[:-1]                                  # (n_mid, 1, H) f32
    ew_last = ews[-1].astype(bf16)                      # (H, H) bf16
    eb_last_scaled = ebs[-1] * jnp.float32(n)           # (1, H) f32
    dws_b = dws.astype(bf16)                            # (n_dec, H, H) bf16

    # Aggregation weight as a lane row for the VPU mul + lane-reduce (f32).
    aw_row = aw.T                                       # (1, H)

    def kernel(x_ref,        # (tb*N, DIN_PAD) bf16
               ew0_ref,      # (DIN_PAD, H)    bf16
               eb0_ref,      # (1, H)          f32
               ews_ref,      # (n_mid, H, H)   bf16
               ebs_ref,      # (n_mid, 1, H)   f32
               ewl_ref,      # (H, H)          bf16   last encoder Linear (post-sum)
               ebl_ref,      # (1, H)          f32    last encoder bias, pre-scaled by N
               dws_ref,      # (n_dec, H, H)   bf16
               dbs_ref,      # (n_dec, 1, H)   f32
               aw_ref,       # (1, H)          f32
               ab_ref,       # (1, 1)          f32
               o_ref):       # (tb, 1)         f32
        # -------- Encoder: bf16-operand MXU matmuls over all tb*N rows -------
        h = jnp.dot(x_ref[...], ew0_ref[...],
                    preferred_element_type=jnp.float32) + eb0_ref[...]
        for i in range(n_mid):
            h = jnp.maximum(h, 0.0)
            h = jnp.dot(h.astype(bf16), ews_ref[i],
                        preferred_element_type=jnp.float32) + ebs_ref[i]

        # Last encoder layer: ReLU, then the N-sum is pulled in front of the
        # matmul (linearity) so the matmul runs on tb rows instead of tb*N.
        h = jnp.maximum(h, 0.0)
        h = jnp.sum(h.reshape(tb, n, h_dim), axis=1)            # (tb, H) f32
        h = jnp.dot(h.astype(bf16), ewl_ref[...],
                    preferred_element_type=jnp.float32) + ebl_ref[...]

        # -------- Decoder: (Linear, ReLU) x n_dec with residual every 4 ------
        former = None
        for idx in range(2 * n_dec):
            if RES_ON and idx % 4 == 0:
                former = h
            if RES_ON and idx % 4 == 3:
                h = h + former
            if idx % 2 == 0:                                     # Linear
                li = idx // 2
                h = jnp.dot(h.astype(bf16), dws_ref[li],
                            preferred_element_type=jnp.float32) + dbs_ref[li]
            else:                                                # ReLU
                h = jnp.maximum(h, 0.0)

        # -------- Aggregation: VPU mul + lane reduce (no 1-col MXU push) -----
        logits = jnp.sum(h * aw_ref[...], axis=-1, keepdims=True) + ab_ref[...]
        o_ref[...] = jax.nn.sigmoid(logits)                      # (tb, 1)

    grid_spec = pltpu.PrefetchScalarGridSpec(
        num_scalar_prefetch=0,
        grid=(grid_b,),
        in_specs=[
            pl.BlockSpec((tb * n, DIN_PAD), lambda i: (i, 0)),      # activations stream
            pl.BlockSpec((DIN_PAD, h_dim), lambda i: (0, 0)),       # weights stay resident
            pl.BlockSpec((1, h_dim), lambda i: (0, 0)),
            pl.BlockSpec((n_mid, h_dim, h_dim), lambda i: (0, 0, 0)),
            pl.BlockSpec((n_mid, 1, h_dim), lambda i: (0, 0, 0)),
            pl.BlockSpec((h_dim, h_dim), lambda i: (0, 0)),
            pl.BlockSpec((1, h_dim), lambda i: (0, 0)),
            pl.BlockSpec((n_dec, h_dim, h_dim), lambda i: (0, 0, 0)),
            pl.BlockSpec((n_dec, 1, h_dim), lambda i: (0, 0, 0)),
            pl.BlockSpec((1, h_dim), lambda i: (0, 0)),
            pl.BlockSpec((1, 1), lambda i: (0, 0)),
        ],
        out_specs=pl.BlockSpec((tb, 1), lambda i: (i, 0)),
    )

    out = pl.pallas_call(
        kernel,
        out_shape=jax.ShapeDtypeStruct((b_pad, 1), jnp.float32),
        grid_spec=grid_spec,
        compiler_params=pltpu.CompilerParams(
            dimension_semantics=("parallel",)),   # shards batch tiles across v7x's 2 TCs
    )(x_flat, ew0_p, eb0, ews_mid, ebs_mid, ew_last, eb_last_scaled,
      dws_b, dbs, aw_row, ab)

    # Always return shape (B,).  (torch.squeeze would give a 0-d scalar only
    # when B == 1; keeping the batch axis avoids that collapse.)
    return out[:b, 0]


# ---------------------------------------------------------------------------
# Deterministic parameter init (PyTorch-Linear-style uniform(-1/sqrt(fan_in)))
# ---------------------------------------------------------------------------
def init_params(key):
    def linear(key, fan_in, fan_out):
        kw, kb = jax.random.split(key)
        bound = 1.0 / (fan_in ** 0.5)
        w = jax.random.uniform(kw, (fan_in, fan_out), jnp.float32, -bound, bound)
        b = jax.random.uniform(kb, (1, fan_out), jnp.float32, -bound, bound)
        return w, b

    keys = jax.random.split(key, 1 + ENCODER_LAYERS + DECODER_LAYERS + 1)
    k_iter = iter(keys)

    ew0, eb0 = linear(next(k_iter), INPUT_DIM, HIDDEN_DIM)

    ews, ebs = [], []
    for _ in range(ENCODER_LAYERS):
        w, b = linear(next(k_iter), HIDDEN_DIM, HIDDEN_DIM)
        ews.append(w)
        ebs.append(b)
    ews = jnp.stack(ews)                       # (E, H, H)
    ebs = jnp.stack(ebs)                       # (E, 1, H)

    dws, dbs = [], []
    for _ in range(DECODER_LAYERS):
        w, b = linear(next(k_iter), HIDDEN_DIM, HIDDEN_DIM)
        dws.append(w)
        dbs.append(b)
    dws = jnp.stack(dws)                       # (D, H, H)
    dbs = jnp.stack(dbs)                       # (D, 1, H)

    aw, ab = linear(next(k_iter), HIDDEN_DIM, 1)   # (H, 1), (1, 1)
    return (ew0, eb0, ews, ebs, dws, dbs, aw, ab)


# ---------------------------------------------------------------------------
# Pure-JAX references
# ---------------------------------------------------------------------------
def hvnet_reference_f32(x, params):
    """Faithful f32 mirror of the PyTorch module."""
    (ew0, eb0, ews, ebs, dws, dbs, aw, ab) = params
    h = x @ ew0 + eb0
    for i in range(ews.shape[0]):
        h = jnp.maximum(h, 0.0)
        h = h @ ews[i] + ebs[i]
    h = jnp.sum(h, axis=1)
    former = None
    for idx in range(2 * dws.shape[0]):
        if RES_ON and idx % 4 == 0:
            former = h
        if RES_ON and idx % 4 == 3:
            h = h + former
        if idx % 2 == 0:
            li = idx // 2
            h = h @ dws[li] + dbs[li]
        else:
            h = jnp.maximum(h, 0.0)
    return jax.nn.sigmoid(h @ aw + ab)[:, 0]


def hvnet_reference_matched(x, params):
    """Mirrors the kernel's numerics exactly: bf16 matmul operands with f32
    accumulation, f32 elementwise, and the N-sum hoisted ahead of the last
    encoder Linear.  Strict-tolerance check of the Pallas plumbing."""
    (ew0, eb0, ews, ebs, dws, dbs, aw, ab) = params
    b, n, din = x.shape
    bf16 = jnp.bfloat16

    x_p = jnp.pad(x, ((0, 0), (0, 0), (0, DIN_PAD - din))).astype(bf16)
    ew0_p = jnp.pad(ew0, ((0, DIN_PAD - din), (0, 0))).astype(bf16)
    rows = x_p.reshape(b * n, DIN_PAD)

    h = jnp.dot(rows, ew0_p, preferred_element_type=jnp.float32) + eb0
    for i in range(ews.shape[0] - 1):
        h = jnp.maximum(h, 0.0)
        h = jnp.dot(h.astype(bf16), ews[i].astype(bf16),
                    preferred_element_type=jnp.float32) + ebs[i]
    h = jnp.maximum(h, 0.0)
    h = jnp.sum(h.reshape(b, n, -1), axis=1)
    h = jnp.dot(h.astype(bf16), ews[-1].astype(bf16),
                preferred_element_type=jnp.float32) + ebs[-1] * jnp.float32(n)

    former = None
    for idx in range(2 * dws.shape[0]):
        if RES_ON and idx % 4 == 0:
            former = h
        if RES_ON and idx % 4 == 3:
            h = h + former
        if idx % 2 == 0:
            li = idx // 2
            h = jnp.dot(h.astype(bf16), dws[li].astype(bf16),
                        preferred_element_type=jnp.float32) + dbs[li]
        else:
            h = jnp.maximum(h, 0.0)

    logits = jnp.sum(h * aw.T, axis=-1, keepdims=True) + ab
    return jax.nn.sigmoid(logits)[:, 0]


if __name__ == "__main__":
    key = jax.random.PRNGKey(0)
    kx, kp = jax.random.split(key)

    x = jax.random.normal(kx, (B, N, INPUT_DIM), jnp.float32)
    params = init_params(kp)

    out = hvnet_forward(x, params)
    out = jax.block_until_ready(out)
    assert out.shape == (B,), f"unexpected output shape {out.shape}"

    # Strict check against the bf16-matched reference (same numerics).
    ref_matched = hvnet_reference_matched(x, params)
    assert jnp.allclose(out, ref_matched, atol=1e-4, rtol=1e-4), \
        "kernel mismatch vs bf16-matched reference"

    # Loose sanity check against the faithful f32 module reference
    # (only divergence is bf16 matmul-operand rounding across 9 layers).
    ref_f32 = hvnet_reference_f32(x, params)
    assert jnp.allclose(out, ref_f32, atol=2e-2, rtol=2e-2), \
        "kernel too far from f32 module reference"

    print("KERNEL_OK")
</pallas_src>

<mosaic_0001>
module attributes {stable_mosaic.version = 11 : i64} {
  func.func @kernel(%arg0: i32, %arg1: memref<16x8xbf16, #tpu.memory_space<vmem>>, %arg2: memref<8x32xbf16, #tpu.memory_space<vmem>>, %arg3: memref<1x32xf32, #tpu.memory_space<vmem>>, %arg4: memref<3x32x32xbf16, #tpu.memory_space<vmem>>, %arg5: memref<3x1x32xf32, #tpu.memory_space<vmem>>, %arg6: memref<32x32xbf16, #tpu.memory_space<vmem>>, %arg7: memref<1x32xf32, #tpu.memory_space<vmem>>, %arg8: memref<4x32x32xbf16, #tpu.memory_space<vmem>>, %arg9: memref<4x1x32xf32, #tpu.memory_space<vmem>>, %arg10: memref<1x32xf32, #tpu.memory_space<vmem>>, %arg11: memref<1x1xf32, #tpu.memory_space<vmem>>, %arg12: memref<2x1xf32, #tpu.memory_space<vmem>>) attributes {dimension_semantics = [#tpu.dimension_semantics<parallel>], iteration_bounds = array<i64: 1>, scalar_prefetch = 0 : i64, scratch_operands = 0 : i64, tpu.core_type = #tpu.core_type<tc>, window_params = [{transform_indices = @transform_0, window_bounds = array<i64: 16, 8>}, {pipeline_mode = #tpu.pipeline_mode<synchronous>, transform_indices = @transform_1, window_bounds = array<i64: 8, 32>}, {pipeline_mode = #tpu.pipeline_mode<synchronous>, transform_indices = @transform_2, window_bounds = array<i64: 1, 32>}, {pipeline_mode = #tpu.pipeline_mode<synchronous>, transform_indices = @transform_3, window_bounds = array<i64: 3, 32, 32>}, {pipeline_mode = #tpu.pipeline_mode<synchronous>, transform_indices = @transform_4, window_bounds = array<i64: 3, 1, 32>}, {pipeline_mode = #tpu.pipeline_mode<synchronous>, transform_indices = @transform_5, window_bounds = array<i64: 32, 32>}, {pipeline_mode = #tpu.pipeline_mode<synchronous>, transform_indices = @transform_6, window_bounds = array<i64: 1, 32>}, {pipeline_mode = #tpu.pipeline_mode<synchronous>, transform_indices = @transform_7, window_bounds = array<i64: 4, 32, 32>}, {pipeline_mode = #tpu.pipeline_mode<synchronous>, transform_indices = @transform_8, window_bounds = array<i64: 4, 1, 32>}, {pipeline_mode = #tpu.pipeline_mode<synchronous>, transform_indices = @transform_9, window_bounds = array<i64: 1, 32>}, {pipeline_mode = #tpu.pipeline_mode<synchronous>, transform_indices = @transform_10, window_bounds = array<i64: 1, 1>}, {transform_indices = @transform_11, window_bounds = array<i64: 2, 1>}]} {
    %c0 = arith.constant 0 : index
    %c0_0 = arith.constant 0 : index
    %0 = vector.load %arg1[%c0, %c0_0] : memref<16x8xbf16, #tpu.memory_space<vmem>>, vector<16x8xbf16>
    %c0_1 = arith.constant 0 : index
    %c0_2 = arith.constant 0 : index
    %1 = vector.load %arg2[%c0_1, %c0_2] : memref<8x32xbf16, #tpu.memory_space<vmem>>, vector<8x32xbf16>
    %cst = arith.constant dense<0.000000e+00> : vector<16x32xf32>
    %2 = tpu.matmul %0, %1, %cst {dimension_numbers = #tpu.dot_dimension_numbers<[1], [0], [0], [1], [0, 0, 1, 1], [], []>} : vector<16x8xbf16>, vector<8x32xbf16>, vector<16x32xf32> -> vector<16x32xf32>
    %c0_3 = arith.constant 0 : index
    %c0_4 = arith.constant 0 : index
    %3 = vector.load %arg3[%c0_3, %c0_4] : memref<1x32xf32, #tpu.memory_space<vmem>>, vector<1x32xf32>
    %4 = vector.broadcast %3 : vector<1x32xf32> to vector<16x32xf32>
    %5 = arith.addf %2, %4 : vector<16x32xf32>
    %cst_5 = arith.constant 0.000000e+00 : f32
    %6 = vector.broadcast %cst_5 : f32 to vector<16x32xf32>
    %7 = arith.maximumf %5, %6 : vector<16x32xf32>
    %8 = arith.truncf %7 : vector<16x32xf32> to vector<16x32xbf16>
    %c0_6 = arith.constant 0 : index
    %c0_7 = arith.constant 0 : index
    %c0_8 = arith.constant 0 : index
    %9 = vector.load %arg4[%c0_6, %c0_7, %c0_8] : memref<3x32x32xbf16, #tpu.memory_space<vmem>>, vector<1x32x32xbf16>
    %10 = vector.shape_cast %9 : vector<1x32x32xbf16> to vector<32x32xbf16>
    %cst_9 = arith.constant dense<0.000000e+00> : vector<16x32xf32>
    %11 = tpu.matmul %8, %10, %cst_9 {dimension_numbers = #tpu.dot_dimension_numbers<[1], [0], [0], [1], [0, 0, 1, 1], [], []>} : vector<16x32xbf16>, vector<32x32xbf16>, vector<16x32xf32> -> vector<16x32xf32>
    %c0_10 = arith.constant 0 : index
    %c0_11 = arith.constant 0 : index
    %c0_12 = arith.constant 0 : index
    %12 = vector.load %arg5[%c0_10, %c0_11, %c0_12] : memref<3x1x32xf32, #tpu.memory_space<vmem>>, vector<1x1x32xf32>
    %13 = vector.shape_cast %12 : vector<1x1x32xf32> to vector<1x32xf32>
    %14 = vector.broadcast %13 : vector<1x32xf32> to vector<16x32xf32>
    %15 = arith.addf %11, %14 : vector<16x32xf32>
    %cst_13 = arith.constant 0.000000e+00 : f32
    %16 = vector.broadcast %cst_13 : f32 to vector<16x32xf32>
    %17 = arith.maximumf %15, %16 : vector<16x32xf32>
    %18 = arith.truncf %17 : vector<16x32xf32> to vector<16x32xbf16>
    %c1 = arith.constant 1 : index
    %c0_14 = arith.constant 0 : index
    %c0_15 = arith.constant 0 : index
    %19 = vector.load %arg4[%c1, %c0_14, %c0_15] : memref<3x32x32xbf16, #tpu.memory_space<vmem>>, vector<1x32x32xbf16>
    %20 = vector.shape_cast %19 : vector<1x32x32xbf16> to vector<32x32xbf16>
    %cst_16 = arith.constant dense<0.000000e+00> : vector<16x32xf32>
    %21 = tpu.matmul %18, %20, %cst_16 {dimension_numbers = #tpu.dot_dimension_numbers<[1], [0], [0], [1], [0, 0, 1, 1], [], []>} : vector<16x32xbf16>, vector<32x32xbf16>, vector<16x32xf32> -> vector<16x32xf32>
    %c1_17 = arith.constant 1 : index
    %c0_18 = arith.constant 0 : index
    %c0_19 = arith.constant 0 : index
    %22 = vector.load %arg5[%c1_17, %c0_18, %c0_19] : memref<3x1x32xf32, #tpu.memory_space<vmem>>, vector<1x1x32xf32>
    %23 = vector.shape_cast %22 : vector<1x1x32xf32> to vector<1x32xf32>
    %24 = vector.broadcast %23 : vector<1x32xf32> to vector<16x32xf32>
    %25 = arith.addf %21, %24 : vector<16x32xf32>
    %cst_20 = arith.constant 0.000000e+00 : f32
    %26 = vector.broadcast %cst_20 : f32 to vector<16x32xf32>
    %27 = arith.maximumf %25, %26 : vector<16x32xf32>
    %28 = arith.truncf %27 : vector<16x32xf32> to vector<16x32xbf16>
    %c2 = arith.constant 2 : index
    %c0_21 = arith.constant 0 : index
    %c0_22 = arith.constant 0 : index
    %29 = vector.load %arg4[%c2, %c0_21, %c0_22] : memref<3x32x32xbf16, #tpu.memory_space<vmem>>, vector<1x32x32xbf16>
    %30 = vector.shape_cast %29 : vector<1x32x32xbf16> to vector<32x32xbf16>
    %cst_23 = arith.constant dense<0.000000e+00> : vector<16x32xf32>
    %31 = tpu.matmul %28, %30, %cst_23 {dimension_numbers = #tpu.dot_dimension_numbers<[1], [0], [0], [1], [0, 0, 1, 1], [], []>} : vector<16x32xbf16>, vector<32x32xbf16>, vector<16x32xf32> -> vector<16x32xf32>
    %c2_24 = arith.constant 2 : index
    %c0_25 = arith.constant 0 : index
    %c0_26 = arith.constant 0 : index
    %32 = vector.load %arg5[%c2_24, %c0_25, %c0_26] : memref<3x1x32xf32, #tpu.memory_space<vmem>>, vector<1x1x32xf32>
    %33 = vector.shape_cast %32 : vector<1x1x32xf32> to vector<1x32xf32>
    %34 = vector.broadcast %33 : vector<1x32xf32> to vector<16x32xf32>
    %35 = arith.addf %31, %34 : vector<16x32xf32>
    %cst_27 = arith.constant 0.000000e+00 : f32
    %36 = vector.broadcast %cst_27 : f32 to vector<16x32xf32>
    %37 = arith.maximumf %35, %36 : vector<16x32xf32>
    %38 = vector.shape_cast %37 : vector<16x32xf32> to vector<2x8x32xf32>
    %cst_28 = arith.constant dense<0.000000e+00> : vector<2x32xf32>
    %39 = vector.multi_reduction <add>, %38, %cst_28 [1] : vector<2x8x32xf32> to vector<2x32xf32>
    %40 = arith.truncf %39 : vector<2x32xf32> to vector<2x32xbf16>
    %c0_29 = arith.constant 0 : index
    %c0_30 = arith.constant 0 : index
    %41 = vector.load %arg6[%c0_29, %c0_30] : memref<32x32xbf16, #tpu.memory_space<vmem>>, vector<32x32xbf16>
    %cst_31 = arith.constant dense<0.000000e+00> : vector<2x32xf32>
    %42 = tpu.matmul %40, %41, %cst_31 {dimension_numbers = #tpu.dot_dimension_numbers<[1], [0], [0], [1], [0, 0, 1, 1], [], []>} : vector<2x32xbf16>, vector<32x32xbf16>, vector<2x32xf32> -> vector<2x32xf32>
    %c0_32 = arith.constant 0 : index
    %c0_33 = arith.constant 0 : index
    %43 = vector.load %arg7[%c0_32, %c0_33] : memref<1x32xf32, #tpu.memory_space<vmem>>, vector<1x32xf32>
    %44 = vector.broadcast %43 : vector<1x32xf32> to vector<2x32xf32>
    %45 = arith.addf %42, %44 : vector<2x32xf32>
    %46 = arith.truncf %45 : vector<2x32xf32> to vector<2x32xbf16>
    %c0_34 = arith.constant 0 : index
    %c0_35 = arith.constant 0 : index
    %c0_36 = arith.constant 0 : index
    %47 = vector.load %arg8[%c0_34, %c0_35, %c0_36] : memref<4x32x32xbf16, #tpu.memory_space<vmem>>, vector<1x32x32xbf16>
    %48 = vector.shape_cast %47 : vector<1x32x32xbf16> to vector<32x32xbf16>
    %cst_37 = arith.constant dense<0.000000e+00> : vector<2x32xf32>
    %49 = tpu.matmul %46, %48, %cst_37 {dimension_numbers = #tpu.dot_dimension_numbers<[1], [0], [0], [1], [0, 0, 1, 1], [], []>} : vector<2x32xbf16>, vector<32x32xbf16>, vector<2x32xf32> -> vector<2x32xf32>
    %c0_38 = arith.constant 0 : index
    %c0_39 = arith.constant 0 : index
    %c0_40 = arith.constant 0 : index
    %50 = vector.load %arg9[%c0_38, %c0_39, %c0_40] : memref<4x1x32xf32, #tpu.memory_space<vmem>>, vector<1x1x32xf32>
    %51 = vector.shape_cast %50 : vector<1x1x32xf32> to vector<1x32xf32>
    %52 = vector.broadcast %51 : vector<1x32xf32> to vector<2x32xf32>
    %53 = arith.addf %49, %52 : vector<2x32xf32>
    %cst_41 = arith.constant 0.000000e+00 : f32
    %54 = vector.broadcast %cst_41 : f32 to vector<2x32xf32>
    %55 = arith.maximumf %53, %54 : vector<2x32xf32>
    %56 = arith.truncf %55 : vector<2x32xf32> to vector<2x32xbf16>
    %c1_42 = arith.constant 1 : index
    %c0_43 = arith.constant 0 : index
    %c0_44 = arith.constant 0 : index
    %57 = vector.load %arg8[%c1_42, %c0_43, %c0_44] : memref<4x32x32xbf16, #tpu.memory_space<vmem>>, vector<1x32x32xbf16>
    %58 = vector.shape_cast %57 : vector<1x32x32xbf16> to vector<32x32xbf16>
    %cst_45 = arith.constant dense<0.000000e+00> : vector<2x32xf32>
    %59 = tpu.matmul %56, %58, %cst_45 {dimension_numbers = #tpu.dot_dimension_numbers<[1], [0], [0], [1], [0, 0, 1, 1], [], []>} : vector<2x32xbf16>, vector<32x32xbf16>, vector<2x32xf32> -> vector<2x32xf32>
    %c1_46 = arith.constant 1 : index
    %c0_47 = arith.constant 0 : index
    %c0_48 = arith.constant 0 : index
    %60 = vector.load %arg9[%c1_46, %c0_47, %c0_48] : memref<4x1x32xf32, #tpu.memory_space<vmem>>, vector<1x1x32xf32>
    %61 = vector.shape_cast %60 : vector<1x1x32xf32> to vector<1x32xf32>
    %62 = vector.broadcast %61 : vector<1x32xf32> to vector<2x32xf32>
    %63 = arith.addf %59, %62 : vector<2x32xf32>
    %64 = arith.addf %63, %45 : vector<2x32xf32>
    %cst_49 = arith.constant 0.000000e+00 : f32
    %65 = vector.broadcast %cst_49 : f32 to vector<2x32xf32>
    %66 = arith.maximumf %64, %65 : vector<2x32xf32>
    %67 = arith.truncf %66 : vector<2x32xf32> to vector<2x32xbf16>
    %c2_50 = arith.constant 2 : index
    %c0_51 = arith.constant 0 : index
    %c0_52 = arith.constant 0 : index
    %68 = vector.load %arg8[%c2_50, %c0_51, %c0_52] : memref<4x32x32xbf16, #tpu.memory_space<vmem>>, vector<1x32x32xbf16>
    %69 = vector.shape_cast %68 : vector<1x32x32xbf16> to vector<32x32xbf16>
    %cst_53 = arith.constant dense<0.000000e+00> : vector<2x32xf32>
    %70 = tpu.matmul %67, %69, %cst_53 {dimension_numbers = #tpu.dot_dimension_numbers<[1], [0], [0], [1], [0, 0, 1, 1], [], []>} : vector<2x32xbf16>, vector<32x32xbf16>, vector<2x32xf32> -> vector<2x32xf32>
    %c2_54 = arith.constant 2 : index
    %c0_55 = arith.constant 0 : index
    %c0_56 = arith.constant 0 : index
    %71 = vector.load %arg9[%c2_54, %c0_55, %c0_56] : memref<4x1x32xf32, #tpu.memory_space<vmem>>, vector<1x1x32xf32>
    %72 = vector.shape_cast %71 : vector<1x1x32xf32> to vector<1x32xf32>
    %73 = vector.broadcast %72 : vector<1x32xf32> to vector<2x32xf32>
    %74 = arith.addf %70, %73 : vector<2x32xf32>
    %cst_57 = arith.constant 0.000000e+00 : f32
    %75 = vector.broadcast %cst_57 : f32 to vector<2x32xf32>
    %76 = arith.maximumf %74, %75 : vector<2x32xf32>
    %77 = arith.truncf %76 : vector<2x32xf32> to vector<2x32xbf16>
    %c3 = arith.constant 3 : index
    %c0_58 = arith.constant 0 : index
    %c0_59 = arith.constant 0 : index
    %78 = vector.load %arg8[%c3, %c0_58, %c0_59] : memref<4x32x32xbf16, #tpu.memory_space<vmem>>, vector<1x32x32xbf16>
    %79 = vector.shape_cast %78 : vector<1x32x32xbf16> to vector<32x32xbf16>
    %cst_60 = arith.constant dense<0.000000e+00> : vector<2x32xf32>
    %80 = tpu.matmul %77, %79, %cst_60 {dimension_numbers = #tpu.dot_dimension_numbers<[1], [0], [0], [1], [0, 0, 1, 1], [], []>} : vector<2x32xbf16>, vector<32x32xbf16>, vector<2x32xf32> -> vector<2x32xf32>
    %c3_61 = arith.constant 3 : index
    %c0_62 = arith.constant 0 : index
    %c0_63 = arith.constant 0 : index
    %81 = vector.load %arg9[%c3_61, %c0_62, %c0_63] : memref<4x1x32xf32, #tpu.memory_space<vmem>>, vector<1x1x32xf32>
    %82 = vector.shape_cast %81 : vector<1x1x32xf32> to vector<1x32xf32>
    %83 = vector.broadcast %82 : vector<1x32xf32> to vector<2x32xf32>
    %84 = arith.addf %80, %83 : vector<2x32xf32>
    %85 = arith.addf %84, %66 : vector<2x32xf32>
    %cst_64 = arith.constant 0.000000e+00 : f32
    %86 = vector.broadcast %cst_64 : f32 to vector<2x32xf32>
    %87 = arith.maximumf %85, %86 : vector<2x32xf32>
    %c0_65 = arith.constant 0 : index
    %c0_66 = arith.constant 0 : index
    %88 = vector.load %arg10[%c0_65, %c0_66] : memref<1x32xf32, #tpu.memory_space<vmem>>, vector<1x32xf32>
    %89 = vector.broadcast %88 : vector<1x32xf32> to vector<2x32xf32>
    %90 = arith.mulf %87, %89 : vector<2x32xf32>
    %cst_67 = arith.constant dense<0.000000e+00> : vector<2xf32>
    %91 = vector.multi_reduction <add>, %90, %cst_67 [1] : vector<2x32xf32> to vector<2xf32>
    %92 = vector.shape_cast %91 : vector<2xf32> to vector<2x1xf32>
    %c0_68 = arith.constant 0 : index
    %c0_69 = arith.constant 0 : index
    %93 = vector.load %arg11[%c0_68, %c0_69] : memref<1x1xf32, #tpu.memory_space<vmem>>, vector<1x1xf32>
    %94 = vector.broadcast %93 : vector<1x1xf32> to vector<2x1xf32>
    %95 = arith.addf %92, %94 : vector<2x1xf32>
    %96 = arith.negf %95 : vector<2x1xf32>
    %97 = math.exp %96 : vector<2x1xf32>
    %cst_70 = arith.constant 1.000000e+00 : f32
    %98 = vector.broadcast %cst_70 : f32 to vector<2x1xf32>
    %99 = arith.addf %98, %97 : vector<2x1xf32>
    %100 = arith.divf %98, %99 : vector<2x1xf32>
    %c0_71 = arith.constant 0 : index
    %c0_72 = arith.constant 0 : index
    %101 = vector.load %arg12[%c0_71, %c0_72] : memref<2x1xf32, #tpu.memory_space<vmem>>, vector<2x1xf32>
    tpu.vector_store %arg12[%c0_71, %c0_72], %100 {strides = array<i32>} : memref<2x1xf32, #tpu.memory_space<vmem>>, vector<2x1xf32>,
    return
  }
  func.func @transform_0(%arg0: i32) -> (i32, i32) {
    %c0_i32 = arith.constant 0 : i32
    %c0_i32_0 = arith.constant 0 : i32
    return %arg0, %c0_i32 : i32, i32
  }
  func.func @transform_1(%arg0: i32) -> (i32, i32) {
    %c0_i32 = arith.constant 0 : i32
    %c0_i32_0 = arith.constant 0 : i32
    %c0_i32_1 = arith.constant 0 : i32
    return %c0_i32, %c0_i32_0 : i32, i32
  }
  func.func @transform_2(%arg0: i32) -> (i32, i32) {
    %c0_i32 = arith.constant 0 : i32
    %c0_i32_0 = arith.constant 0 : i32
    %c0_i32_1 = arith.constant 0 : i32
    return %c0_i32, %c0_i32_0 : i32, i32
  }
  func.func @transform_3(%arg0: i32) -> (i32, i32, i32) {
    %c0_i32 = arith.constant 0 : i32
    %c0_i32_0 = arith.constant 0 : i32
    %c0_i32_1 = arith.constant 0 : i32
    %c0_i32_2 = arith.constant 0 : i32
    return %c0_i32, %c0_i32_0, %c0_i32_1 : i32, i32, i32
  }
  func.func @transform_4(%arg0: i32) -> (i32, i32, i32) {
    %c0_i32 = arith.constant 0 : i32
    %c0_i32_0 = arith.constant 0 : i32
    %c0_i32_1 = arith.constant 0 : i32
    %c0_i32_2 = arith.constant 0 : i32
    return %c0_i32, %c0_i32_0, %c0_i32_1 : i32, i32, i32
  }
  func.func @transform_5(%arg0: i32) -> (i32, i32) {
    %c0_i32 = arith.constant 0 : i32
    %c0_i32_0 = arith.constant 0 : i32
    %c0_i32_1 = arith.constant 0 : i32
    return %c0_i32, %c0_i32_0 : i32, i32
  }
  func.func @transform_6(%arg0: i32) -> (i32, i32) {
    %c0_i32 = arith.constant 0 : i32
    %c0_i32_0 = arith.constant 0 : i32
    %c0_i32_1 = arith.constant 0 : i32
    return %c0_i32, %c0_i32_0 : i32, i32
  }
  func.func @transform_7(%arg0: i32) -> (i32, i32, i32) {
    %c0_i32 = arith.constant 0 : i32
    %c0_i32_0 = arith.constant 0 : i32
    %c0_i32_1 = arith.constant 0 : i32
    %c0_i32_2 = arith.constant 0 : i32
    return %c0_i32, %c0_i32_0, %c0_i32_1 : i32, i32, i32
  }
  func.func @transform_8(%arg0: i32) -> (i32, i32, i32) {
    %c0_i32 = arith.constant 0 : i32
    %c0_i32_0 = arith.constant 0 : i32
    %c0_i32_1 = arith.constant 0 : i32
    %c0_i32_2 = arith.constant 0 : i32
    return %c0_i32, %c0_i32_0, %c0_i32_1 : i32, i32, i32
  }
  func.func @transform_9(%arg0: i32) -> (i32, i32) {
    %c0_i32 = arith.constant 0 : i32
    %c0_i32_0 = arith.constant 0 : i32
    %c0_i32_1 = arith.constant 0 : i32
    return %c0_i32, %c0_i32_0 : i32, i32
  }
  func.func @transform_10(%arg0: i32) -> (i32, i32) {
    %c0_i32 = arith.constant 0 : i32
    %c0_i32_0 = arith.constant 0 : i32
    %c0_i32_1 = arith.constant 0 : i32
    return %c0_i32, %c0_i32_0 : i32, i32
  }
  func.func @transform_11(%arg0: i32) -> (i32, i32) {
    %c0_i32 = arith.constant 0 : i32
    %c0_i32_0 = arith.constant 0 : i32
    return %arg0, %c0_i32 : i32, i32
  }
}

</mosaic_0001>

<llo_original>
// kernel: tpu_custom_call.1
$region0: #{tpu_custom_call.1}
  #allocation0 [shape = 'u32[]', space=smem, size = 0x4, offset = 0x4, fixed_abs, tag = 'smem constant byte address 0x4 - core index']
  #allocation1 [shape = 'u32[144,128]{1,0:T(1,128)}', space=vmem, size = 0x12000, scoped, tag = 'internal scratch']
  #allocation2 [shape = 'f32[1,1]{1,0:T(1,128)S(1)}', space=vmem, size = 0x200, scoped, tag = 'scoped memory for tpu_custom_call.1']
  %s0 = inlined_call_operand.vmem [shape: bf16[16,8], index: 0, kind: input, shape index: {}]
  %s1 = inlined_call_operand.vmem [shape: bf16[8,32], index: 1, kind: input, shape index: {}]
  %s2 = inlined_call_operand.vmem [shape: f32[1,32], index: 2, kind: input, shape index: {}]
  %s3 = inlined_call_operand.hbm [shape: bf16[3,32,32], index: 3, kind: input, shape index: {}]
  %s4 = inlined_call_operand.vmem [shape: f32[3,1,32], index: 4, kind: input, shape index: {}]
  %s5 = inlined_call_operand.vmem [shape: bf16[32,32], index: 5, kind: input, shape index: {}]
  %s6 = inlined_call_operand.vmem [shape: f32[1,32], index: 6, kind: input, shape index: {}]
  %s7 = inlined_call_operand.hbm [shape: bf16[4,32,32], index: 7, kind: input, shape index: {}]
  %s8 = inlined_call_operand.vmem [shape: f32[4,1,32], index: 8, kind: input, shape index: {}]
  %s9 = inlined_call_operand.vmem [shape: f32[1,32], index: 9, kind: input, shape index: {}]
  %s10 = inlined_call_operand.<no memory space> [shape: f32[1,1], index: 10, kind: input, shape index: {}]
  %s11 = inlined_call_operand.vmem [shape: f32[2,1], index: 11, kind: output, shape index: {}]
  %s12 = sld [smem:[#allocation0]]
  $region62: #{tpu_custom_call.1} parent=0
    _
  %s14 = ssub.s32 1, %s12
  %s15 = scalar_select 0, %s14, %s12
  %v16 = vstv %s10
  %17 = vst [vmem:[#allocation2] sm:$0x1] %v16
  $region1: #{tpu_custom_call.1} parent=0
    #allocation3 [shape = 'u8[24576]{0}', space=vmem, size = 0x6000, scoped, tag = 'input window, operand 3, single buffered']
    #allocation4 [shape = 's32[1]{0}', space=sflag, size = 0x4, scoped, tag = 'scoped memory for tpu_custom_call.1']
    #allocation5 [shape = 'u8[32768]{0}', space=vmem, size = 0x8000, scoped, tag = 'input window, operand 7, single buffered']
    #allocation6 [shape = 's32[1]{0}', space=sflag, size = 0x4, scoped, tag = 'scoped memory for tpu_custom_call.1']
    %18 = vsyncpa [#allocation4], 0
    %19 = vsyncpa [#allocation6], 0
    // Predicated region
    $region2: #{tpu_custom_call.1} parent=1 // pred_check
      _
    $region3: #{tpu_custom_call.1} parent=1 // pred_check_branch
      %21 = sbr.rel (0) target = $region5
    $region4: #{tpu_custom_call.1} parent=1 // pred_region
      _
    $region5: #{tpu_custom_call.1} parent=1 // pred_fallthru
      _
    // Predicated region
    $region6: #{tpu_custom_call.1} parent=1 // pred_check
      _
    $region7: #{tpu_custom_call.1} parent=1 // pred_check_branch
      %23 = sbr.rel (0) target = $region9
    $region8: #{tpu_custom_call.1} parent=1 // pred_region
      _
    $region9: #{tpu_custom_call.1} parent=1 // pred_fallthru
      _
    // Predicated region
    $region10: #{tpu_custom_call.1} parent=1 // pred_check
      _
    $region11: #{tpu_custom_call.1} parent=1 // pred_check_branch
      %25 = sbr.rel (0) target = $region13
    $region12: #{tpu_custom_call.1} parent=1 // pred_region
      _
    $region13: #{tpu_custom_call.1} parent=1 // pred_fallthru
      _
    // Predicated region
    $region14: #{tpu_custom_call.1} parent=1 // pred_check
      _
    $region15: #{tpu_custom_call.1} parent=1 // pred_check_branch
      %27 = sbr.rel (0) target = $region17
    $region16: #{tpu_custom_call.1} parent=1 // pred_region
      %s29 = ssub.s32 768, 768
      %30 = vsyncadd [#allocation4], %s29
      %s31 = sshll.u32 [#allocation3], 4
      %s32 = int_to_ptr.vmem [resolvable:$true] %s31
      %37 = dma.hbm_to_vmem [thread:$0]  %s3, 768, %s32, [#allocation4], 64, 64, 4
    $region17: #{tpu_custom_call.1} parent=1 // pred_fallthru
      _
    // Predicated region
    $region18: #{tpu_custom_call.1} parent=1 // pred_check
      _
    $region19: #{tpu_custom_call.1} parent=1 // pred_check_branch
      %39 = sbr.rel (0) target = $region21
    $region20: #{tpu_custom_call.1} parent=1 // pred_region
      _
    $region21: #{tpu_custom_call.1} parent=1 // pred_fallthru
      _
    // Predicated region
    $region22: #{tpu_custom_call.1} parent=1 // pred_check
      _
    $region23: #{tpu_custom_call.1} parent=1 // pred_check_branch
      %41 = sbr.rel (0) target = $region25
    $region24: #{tpu_custom_call.1} parent=1 // pred_region
      _
    $region25: #{tpu_custom_call.1} parent=1 // pred_fallthru
      _
    // Predicated region
    $region26: #{tpu_custom_call.1} parent=1 // pred_check
      _
    $region27: #{tpu_custom_call.1} parent=1 // pred_check_branch
      %43 = sbr.rel (0) target = $region29
    $region28: #{tpu_custom_call.1} parent=1 // pred_region
      _
    $region29: #{tpu_custom_call.1} parent=1 // pred_fallthru
      _
    // Predicated region
    $region30: #{tpu_custom_call.1} parent=1 // pred_check
      _
    $region31: #{tpu_custom_call.1} parent=1 // pred_check_branch
      %45 = sbr.rel (0) target = $region33
    $region32: #{tpu_custom_call.1} parent=1 // pred_region
      %s47 = ssub.s32 1024, 1024
      %48 = vsyncadd [#allocation6], %s47
      %s49 = sshll.u32 [#allocation5], 4
      %s50 = int_to_ptr.vmem [resolvable:$true] %s49
      %55 = dma.hbm_to_vmem [thread:$0]  %s7, 1024, %s50, [#allocation6], 64, 64, 4
    $region33: #{tpu_custom_call.1} parent=1 // pred_fallthru
      _
    // Predicated region
    $region34: #{tpu_custom_call.1} parent=1 // pred_check
      _
    $region35: #{tpu_custom_call.1} parent=1 // pred_check_branch
      %57 = sbr.rel (0) target = $region37
    $region36: #{tpu_custom_call.1} parent=1 // pred_region
      _
    $region37: #{tpu_custom_call.1} parent=1 // pred_fallthru
      _
    // Predicated region
    $region38: #{tpu_custom_call.1} parent=1 // pred_check
      _
    $region39: #{tpu_custom_call.1} parent=1 // pred_check_branch
      %59 = sbr.rel (0) target = $region41
    $region40: #{tpu_custom_call.1} parent=1 // pred_region
      _
    $region41: #{tpu_custom_call.1} parent=1 // pred_fallthru
      _
    // Predicated region
    $region42: #{tpu_custom_call.1} parent=1 // pred_check
      _
    $region43: #{tpu_custom_call.1} parent=1 // pred_check_branch
      %61 = sbr.rel (0) target = $region45
    $region44: #{tpu_custom_call.1} parent=1 // pred_region
      _
    $region45: #{tpu_custom_call.1} parent=1 // pred_fallthru
      _
    // Predicated region
    $region46: #{tpu_custom_call.1} parent=1 // pred_check
      _
    $region47: #{tpu_custom_call.1} parent=1 // pred_check_branch
      %63 = sbr.rel (0) target = $region49
    $region48: #{tpu_custom_call.1} parent=1 // pred_region
      %64 = dma.done [#allocation4], 768
    $region49: #{tpu_custom_call.1} parent=1 // pred_fallthru
      _
    // Predicated region
    $region50: #{tpu_custom_call.1} parent=1 // pred_check
      _
    $region51: #{tpu_custom_call.1} parent=1 // pred_check_branch
      %66 = sbr.rel (0) target = $region53
    $region52: #{tpu_custom_call.1} parent=1 // pred_region
      %67 = dma.done [#allocation6], 1024
    $region53: #{tpu_custom_call.1} parent=1 // pred_fallthru
      _
    %v69 = vld [vmem:[%s0] sm:$0xf]
    %v70 = vld [vmem:[%s0 + $0x4] sm:$0xf]
    %v71 = vld [vmem:[%s1] sm:$0xf]
    %v72 = vld [vmem:[%s2] sm:$0x1]
    %v74 = vlaneseq
    %v75 = vshrl.u32 %v74, 7
    %v76 = vsub.s32 0, %v75
    %v77 = vrot.slane %v72, %v76
    %v81 = vunpack.c.l.b16 %v69
    %v82 = vunpack.c.l.b16 %v70
    %v83 = vpack.c.b16 %v82, %v81
    %vm84 = vcmask 64512
    %v86 = vsel %vm84, %v83, 0
    %vm88 = vcmask 1043456
    %v90 = vsel %vm88, %v71, 0
    %92 = vmatprep.subr.bf16.mxu0 0
    %93 = vmatpush1.bf16.msra.mxu0 %v90
    %94 = vmatprep.subr.bf16.mxu0 0
    %95 = vmatpush1.bf16.msra.mxu0 0
    %96 = vmatprep.subr.bf16.mxu0 0
    %97 = vmatpush1.bf16.msra.mxu0 0
    %98 = vmatprep.subr.bf16.mxu0 0
    %99 = vmatpush1.bf16.msra.mxu0 0
    %100 = vmatprep.subr.bf16.mxu0 0
    %101 = vmatpush1.bf16.msra.mxu0 0
    %102 = vmatprep.subr.bf16.mxu0 0
    %103 = vmatpush1.bf16.msra.mxu0 0
    %104 = vmatprep.subr.bf16.mxu0 0
    %105 = vmatpush1.bf16.msra.mxu0 0
    %106 = vmatprep.subr.bf16.mxu0 0
    %107 = vmatpush1.bf16.msra.mxu0 0
    %108 = vmatprep.subr.bf16.mxu0 0
    %109 = vmatpush1.bf16.msra.mxu0 0
    %110 = vmatprep.subr.bf16.mxu0 0
    %111 = vmatpush1.bf16.msra.mxu0 0
    %112 = vmatprep.subr.bf16.mxu0 0
    %113 = vmatpush1.bf16.msra.mxu0 0
    %114 = vmatprep.subr.bf16.mxu0 0
    %115 = vmatpush1.bf16.msra.mxu0 0
    %116 = vmatprep.subr.bf16.mxu0 0
    %117 = vmatpush1.bf16.msra.mxu0 0
    %118 = vmatprep.subr.bf16.mxu0 0
    %119 = vmatpush1.bf16.msra.mxu0 0
    %120 = vmatprep.subr.bf16.mxu0 0
    %121 = vmatpush1.bf16.msra.mxu0 0
    %122 = vmatprep.subr.bf16.mxu0 0
    %123 = vmatpush1.bf16.msra.mxu0 0
    %124 = vmatprep.mubr.bf16.mxu0 0
    %125 = vmatmul.mubr.bf16.gmra.mrb[0].mxu0 %v86
    %v126 = vpop.f32.mrb[0].mxu0
    %v127 = vadd.f32 %v77, %v126
    %v128 = vpop.f32.mrb[0].mxu0
    %v129 = vpop.f32.mrb[0].mxu0
    %v130 = vadd.f32 %v77, %v129
    %v131 = vpop.f32.mrb[0].mxu0
    %132 = vdwg.mxu0
    %v133 = vmax.f32 %v127, 0.0
    %v134 = vmax.f32 %v130, 0.0
    %v135 = vpack.c.bf16 %v134, %v133
    %v136 = vld [vmem:[#allocation3] sm:$0xf]
    %v137 = vld [vmem:[#allocation3 + $0x4] sm:$0xf]
    %v138 = vld [vmem:[#allocation3 + $0x8] sm:$0xf]
    %v139 = vld [vmem:[#allocation3 + $0xc] sm:$0xf]
    %v140 = vld [vmem:[%s4] sm:$0x1]
    %v142 = vlaneseq
    %v143 = vshrl.u32 %v142, 7
    %v144 = vsub.s32 0, %v143
    %v145 = vrot.slane %v140, %v144
    %v151 = vunpack.c.l.b16 %v136
    %v152 = vunpack.c.l.b16 %v137
    %v153 = vunpack.c.l.b16 %v138
    %v154 = vunpack.c.l.b16 %v139
    %v155 = vpack.c.b16 %v152, %v151
    %v156 = vpack.c.b16 %v154, %v153
    %vm159 = vcmask 261120
    %v161 = vsel %vm159, %v135, 0
    %163 = vmatprep.subr.bf16.mxu0 0
    %164 = vmatpush1.bf16.msra.mxu0 %v155
    %165 = vmatprep.subr.bf16.mxu0 0
    %166 = vmatpush1.bf16.msra.mxu0 %v156
    %167 = vmatprep.subr.bf16.mxu0 0
    %168 = vmatpush1.bf16.msra.mxu0 0
    %169 = vmatprep.subr.bf16.mxu0 0
    %170 = vmatpush1.bf16.msra.mxu0 0
    %171 = vmatprep.subr.bf16.mxu0 0
    %172 = vmatpush1.bf16.msra.mxu0 0
    %173 = vmatprep.subr.bf16.mxu0 0
    %174 = vmatpush1.bf16.msra.mxu0 0
    %175 = vmatprep.subr.bf16.mxu0 0
    %176 = vmatpush1.bf16.msra.mxu0 0
    %177 = vmatprep.subr.bf16.mxu0 0
    %178 = vmatpush1.bf16.msra.mxu0 0
    %179 = vmatprep.subr.bf16.mxu0 0
    %180 = vmatpush1.bf16.msra.mxu0 0
    %181 = vmatprep.subr.bf16.mxu0 0
    %182 = vmatpush1.bf16.msra.mxu0 0
    %183 = vmatprep.subr.bf16.mxu0 0
    %184 = vmatpush1.bf16.msra.mxu0 0
    %185 = vmatprep.subr.bf16.mxu0 0
    %186 = vmatpush1.bf16.msra.mxu0 0
    %187 = vmatprep.subr.bf16.mxu0 0
    %188 = vmatpush1.bf16.msra.mxu0 0
    %189 = vmatprep.subr.bf16.mxu0 0
    %190 = vmatpush1.bf16.msra.mxu0 0
    %191 = vmatprep.subr.bf16.mxu0 0
    %192 = vmatpush1.bf16.msra.mxu0 0
    %193 = vmatprep.subr.bf16.mxu0 0
    %194 = vmatpush1.bf16.msra.mxu0 0
    %195 = vmatprep.mubr.bf16.mxu0 0
    %196 = vmatmul.mubr.bf16.gmra.mrb[0].mxu0 %v161
    %v197 = vpop.f32.mrb[0].mxu0
    %v198 = vadd.f32 %v145, %v197
    %v199 = vpop.f32.mrb[0].mxu0
    %v200 = vpop.f32.mrb[0].mxu0
    %v201 = vadd.f32 %v145, %v200
    %v202 = vpop.f32.mrb[0].mxu0
    %203 = vdwg.mxu0
    %v204 = vmax.f32 %v198, 0.0
    %v205 = vmax.f32 %v201, 0.0
    %v206 = vpack.c.bf16 %v205, %v204
    %s207 = scalar_lea.vmem [#allocation3], 16
    %v208 = vld [vmem:[%s207] sm:$0xf]
    %v209 = vld [vmem:[%s207 + $0x4] sm:$0xf]
    %v210 = vld [vmem:[%s207 + $0x8] sm:$0xf]
    %v211 = vld [vmem:[%s207 + $0xc] sm:$0xf]
    %s212 = scalar_lea.vmem %s4, 1
    %v213 = vld [vmem:[%s212] sm:$0x1]
    %v215 = vlaneseq
    %v216 = vshrl.u32 %v215, 7
    %v217 = vsub.s32 0, %v216
    %v218 = vrot.slane %v213, %v217
    %v224 = vunpack.c.l.b16 %v208
    %v225 = vunpack.c.l.b16 %v209
    %v226 = vunpack.c.l.b16 %v210
    %v227 = vunpack.c.l.b16 %v211
    %v228 = vpack.c.b16 %v225, %v224
    %v229 = vpack.c.b16 %v227, %v226
    %v233 = vsel %vm159, %v206, 0
    %235 = vmatprep.subr.bf16.mxu0 0
    %236 = vmatpush1.bf16.msra.mxu0 %v228
    %237 = vmatprep.subr.bf16.mxu0 0
    %238 = vmatpush1.bf16.msra.mxu0 %v229
    %239 = vmatprep.subr.bf16.mxu0 0
    %240 = vmatpush1.bf16.msra.mxu0 0
    %241 = vmatprep.subr.bf16.mxu0 0
    %242 = vmatpush1.bf16.msra.mxu0 0
    %243 = vmatprep.subr.bf16.mxu0 0
    %244 = vmatpush1.bf16.msra.mxu0 0
    %245 = vmatprep.subr.bf16.mxu0 0
    %246 = vmatpush1.bf16.msra.mxu0 0
    %247 = vmatprep.subr.bf16.mxu0 0
    %248 = vmatpush1.bf16.msra.mxu0 0
    %249 = vmatprep.subr.bf16.mxu0 0
    %250 = vmatpush1.bf16.msra.mxu0 0
    %251 = vmatprep.subr.bf16.mxu0 0
    %252 = vmatpush1.bf16.msra.mxu0 0
    %253 = vmatprep.subr.bf16.mxu0 0
    %254 = vmatpush1.bf16.msra.mxu0 0
    %255 = vmatprep.subr.bf16.mxu0 0
    %256 = vmatpush1.bf16.msra.mxu0 0
    %257 = vmatprep.subr.bf16.mxu0 0
    %258 = vmatpush1.bf16.msra.mxu0 0
    %259 = vmatprep.subr.bf16.mxu0 0
    %260 = vmatpush1.bf16.msra.mxu0 0
    %261 = vmatprep.subr.bf16.mxu0 0
    %262 = vmatpush1.bf16.msra.mxu0 0
    %263 = vmatprep.subr.bf16.mxu0 0
    %264 = vmatpush1.bf16.msra.mxu0 0
    %265 = vmatprep.subr.bf16.mxu0 0
    %266 = vmatpush1.bf16.msra.mxu0 0
    %267 = vmatprep.mubr.bf16.mxu0 0
    %268 = vmatmul.mubr.bf16.gmra.mrb[0].mxu0 %v233
    %v269 = vpop.f32.mrb[0].mxu0
    %v270 = vadd.f32 %v218, %v269
    %v271 = vpop.f32.mrb[0].mxu0
    %v272 = vpop.f32.mrb[0].mxu0
    %v273 = vadd.f32 %v218, %v272
    %v274 = vpop.f32.mrb[0].mxu0
    %275 = vdwg.mxu0
    %v276 = vmax.f32 %v270, 0.0
    %v277 = vmax.f32 %v273, 0.0
    %v278 = vpack.c.bf16 %v277, %v276
    %s279 = scalar_lea.vmem [#allocation3], 32
    %v280 = vld [vmem:[%s279] sm:$0xf]
    %v281 = vld [vmem:[%s279 + $0x4] sm:$0xf]
    %v282 = vld [vmem:[%s279 + $0x8] sm:$0xf]
    %v283 = vld [vmem:[%s279 + $0xc] sm:$0xf]
    %s284 = scalar_lea.vmem %s4, 2
    %v285 = vld [vmem:[%s284] sm:$0x1]
    %v287 = vlaneseq
    %v288 = vshrl.u32 %v287, 7
    %v289 = vsub.s32 0, %v288
    %v290 = vrot.slane %v285, %v289
    %v296 = vunpack.c.l.b16 %v280
    %v297 = vunpack.c.l.b16 %v281
    %v298 = vunpack.c.l.b16 %v282
    %v299 = vunpack.c.l.b16 %v283
    %v300 = vpack.c.b16 %v297, %v296
    %v301 = vpack.c.b16 %v299, %v298
    %v305 = vsel %vm159, %v278, 0
    %307 = vmatprep.subr.bf16.mxu0 0
    %308 = vmatpush1.bf16.msra.mxu0 %v300
    %309 = vmatprep.subr.bf16.mxu0 0
    %310 = vmatpush1.bf16.msra.mxu0 %v301
    %311 = vmatprep.subr.bf16.mxu0 0
    %312 = vmatpush1.bf16.msra.mxu0 0
    %313 = vmatprep.subr.bf16.mxu0 0
    %314 = vmatpush1.bf16.msra.mxu0 0
    %315 = vmatprep.subr.bf16.mxu0 0
    %316 = vmatpush1.bf16.msra.mxu0 0
    %317 = vmatprep.subr.bf16.mxu0 0
    %318 = vmatpush1.bf16.msra.mxu0 0
    %319 = vmatprep.subr.bf16.mxu0 0
    %320 = vmatpush1.bf16.msra.mxu0 0
    %321 = vmatprep.subr.bf16.mxu0 0
    %322 = vmatpush1.bf16.msra.mxu0 0
    %323 = vmatprep.subr.bf16.mxu0 0
    %324 = vmatpush1.bf16.msra.mxu0 0
    %325 = vmatprep.subr.bf16.mxu0 0
    %326 = vmatpush1.bf16.msra.mxu0 0
    %327 = vmatprep.subr.bf16.mxu0 0
    %328 = vmatpush1.bf16.msra.mxu0 0
    %329 = vmatprep.subr.bf16.mxu0 0
    %330 = vmatpush1.bf16.msra.mxu0 0
    %331 = vmatprep.subr.bf16.mxu0 0
    %332 = vmatpush1.bf16.msra.mxu0 0
    %333 = vmatprep.subr.bf16.mxu0 0
    %334 = vmatpush1.bf16.msra.mxu0 0
    %335 = vmatprep.subr.bf16.mxu0 0
    %336 = vmatpush1.bf16.msra.mxu0 0
    %337 = vmatprep.subr.bf16.mxu0 0
    %338 = vmatpush1.bf16.msra.mxu0 0
    %339 = vmatprep.mubr.bf16.mxu0 0
    %340 = vmatmul.mubr.bf16.gmra.mrb[0].mxu0 %v305
    %v341 = vpop.f32.mrb[0].mxu0
    %v342 = vadd.f32 %v290, %v341
    %v343 = vpop.f32.mrb[0].mxu0
    %v344 = vpop.f32.mrb[0].mxu0
    %v345 = vadd.f32 %v290, %v344
    %v346 = vpop.f32.mrb[0].mxu0
    %347 = vdwg.mxu0
    %v348 = vmax.f32 %v342, 0.0
    %v349 = vmax.f32 %v345, 0.0
    %v350 = vsel %vm159, %v348, 0.0
    %v351 = vrot.slane %v350, 4
    %v352 = vadd.f32 %v350, %v351
    %v353 = vrot.slane %v352, 2
    %v354 = vadd.f32 %v352, %v353
    %v355 = vrot.slane %v354, 1
    %v356 = vadd.f32 %v354, %v355
    %v357 = vsel %vm159, %v349, 0.0
    %v358 = vrot.slane %v357, 4
    %v359 = vadd.f32 %v357, %v358
    %v360 = vrot.slane %v359, 2
    %v361 = vadd.f32 %v359, %v360
    %v362 = vrot.slane %v361, 1
    %v363 = vadd.f32 %v361, %v362
    %v364 = vpack.c.bf16 %v356, %v356
    %v365 = vpack.c.bf16 %v363, %v363
    %v366 = vld [vmem:[%s5] sm:$0xf]
    %v367 = vld [vmem:[%s5 + $0x4] sm:$0xf]
    %v368 = vld [vmem:[%s5 + $0x8] sm:$0xf]
    %v369 = vld [vmem:[%s5 + $0xc] sm:$0xf]
    %v370 = vld [vmem:[%s6] sm:$0x1]
    %v372 = vlaneseq
    %v373 = vshrl.u32 %v372, 7
    %v374 = vsub.s32 0, %v373
    %v375 = vrot.slane %v370, %v374
    %v379 = vunpack.c.l.b16 %v364
    %v380 = vunpack.c.l.b16 %v365
    %vm381 = vcmask 1041409
    %v382 = vsel %vm381, %v380, %v379
    %v383 = vpack.c.b16 %v382, %v382
    %v388 = vunpack.c.l.b16 %v366
    %v389 = vunpack.c.l.b16 %v367
    %v390 = vunpack.c.l.b16 %v368
    %v391 = vunpack.c.l.b16 %v369
    %v392 = vpack.c.b16 %v389, %v388
    %v393 = vpack.c.b16 %v391, %v390
    %v397 = vsel %vm159, %v383, 0
    %399 = vmatprep.subr.bf16.mxu0 0
    %400 = vmatpush1.bf16.msra.mxu0 %v392
    %401 = vmatprep.subr.bf16.mxu0 0
    %402 = vmatpush1.bf16.msra.mxu0 %v393
    %403 = vmatprep.subr.bf16.mxu0 0
    %404 = vmatpush1.bf16.msra.mxu0 0
    %405 = vmatprep.subr.bf16.mxu0 0
    %406 = vmatpush1.bf16.msra.mxu0 0
    %407 = vmatprep.subr.bf16.mxu0 0
    %408 = vmatpush1.bf16.msra.mxu0 0
    %409 = vmatprep.subr.bf16.mxu0 0
    %410 = vmatpush1.bf16.msra.mxu0 0
    %411 = vmatprep.subr.bf16.mxu0 0
    %412 = vmatpush1.bf16.msra.mxu0 0
    %413 = vmatprep.subr.bf16.mxu0 0
    %414 = vmatpush1.bf16.msra.mxu0 0
    %415 = vmatprep.subr.bf16.mxu0 0
    %416 = vmatpush1.bf16.msra.mxu0 0
    %417 = vmatprep.subr.bf16.mxu0 0
    %418 = vmatpush1.bf16.msra.mxu0 0
    %419 = vmatprep.subr.bf16.mxu0 0
    %420 = vmatpush1.bf16.msra.mxu0 0
    %421 = vmatprep.subr.bf16.mxu0 0
    %422 = vmatpush1.bf16.msra.mxu0 0
    %423 = vmatprep.subr.bf16.mxu0 0
    %424 = vmatpush1.bf16.msra.mxu0 0
    %425 = vmatprep.subr.bf16.mxu0 0
    %426 = vmatpush1.bf16.msra.mxu0 0
    %427 = vmatprep.subr.bf16.mxu0 0
    %428 = vmatpush1.bf16.msra.mxu0 0
    %429 = vmatprep.subr.bf16.mxu0 0
    %430 = vmatpush1.bf16.msra.mxu0 0
    %431 = vmatprep.mubr.bf16.mxu0 0
    %432 = vmatmul.mubr.bf16.gmra.mrb[0].mxu0 %v397
    %v433 = vpop.f32.mrb[0].mxu0
    %v434 = vadd.f32 %v375, %v433
    %v435 = vpop.f32.mrb[0].mxu0
    %v436 = vpop.f32.mrb[0].mxu0
    %v437 = vpop.f32.mrb[0].mxu0
    %438 = vdwg.mxu0
    %v439 = vpack.c.bf16 %v434, %v434
    %v440 = vld [vmem:[#allocation5] sm:$0xf]
    %v441 = vld [vmem:[#allocation5 + $0x4] sm:$0xf]
    %v442 = vld [vmem:[#allocation5 + $0x8] sm:$0xf]
    %v443 = vld [vmem:[#allocation5 + $0xc] sm:$0xf]
    %v444 = vld [vmem:[%s8] sm:$0x1]
    %v446 = vlaneseq
    %v447 = vshrl.u32 %v446, 7
    %v448 = vsub.s32 0, %v447
    %v449 = vrot.slane %v444, %v448
    %v455 = vunpack.c.l.b16 %v440
    %v456 = vunpack.c.l.b16 %v441
    %v457 = vunpack.c.l.b16 %v442
    %v458 = vunpack.c.l.b16 %v443
    %v459 = vpack.c.b16 %v456, %v455
    %v460 = vpack.c.b16 %v458, %v457
    %v464 = vsel %vm159, %v439, 0
    %466 = vmatprep.subr.bf16.mxu0 0
    %467 = vmatpush1.bf16.msra.mxu0 %v459
    %468 = vmatprep.subr.bf16.mxu0 0
    %469 = vmatpush1.bf16.msra.mxu0 %v460
    %470 = vmatprep.subr.bf16.mxu0 0
    %471 = vmatpush1.bf16.msra.mxu0 0
    %472 = vmatprep.subr.bf16.mxu0 0
    %473 = vmatpush1.bf16.msra.mxu0 0
    %474 = vmatprep.subr.bf16.mxu0 0
    %475 = vmatpush1.bf16.msra.mxu0 0
    %476 = vmatprep.subr.bf16.mxu0 0
    %477 = vmatpush1.bf16.msra.mxu0 0
    %478 = vmatprep.subr.bf16.mxu0 0
    %479 = vmatpush1.bf16.msra.mxu0 0
    %480 = vmatprep.subr.bf16.mxu0 0
    %481 = vmatpush1.bf16.msra.mxu0 0
    %482 = vmatprep.subr.bf16.mxu0 0
    %483 = vmatpush1.bf16.msra.mxu0 0
    %484 = vmatprep.subr.bf16.mxu0 0
    %485 = vmatpush1.bf16.msra.mxu0 0
    %486 = vmatprep.subr.bf16.mxu0 0
    %487 = vmatpush1.bf16.msra.mxu0 0
    %488 = vmatprep.subr.bf16.mxu0 0
    %489 = vmatpush1.bf16.msra.mxu0 0
    %490 = vmatprep.subr.bf16.mxu0 0
    %491 = vmatpush1.bf16.msra.mxu0 0
    %492 = vmatprep.subr.bf16.mxu0 0
    %493 = vmatpush1.bf16.msra.mxu0 0
    %494 = vmatprep.subr.bf16.mxu0 0
    %495 = vmatpush1.bf16.msra.mxu0 0
    %496 = vmatprep.subr.bf16.mxu0 0
    %497 = vmatpush1.bf16.msra.mxu0 0
    %498 = vmatprep.mubr.bf16.mxu0 0
    %499 = vmatmul.mubr.bf16.gmra.mrb[0].mxu0 %v464
    %v500 = vpop.f32.mrb[0].mxu0
    %v501 = vadd.f32 %v449, %v500
    %v502 = vpop.f32.mrb[0].mxu0
    %v503 = vpop.f32.mrb[0].mxu0
    %v504 = vpop.f32.mrb[0].mxu0
    %505 = vdwg.mxu0
    %v506 = vmax.f32 %v501, 0.0
    %v507 = vpack.c.bf16 %v506, %v506
    %s508 = scalar_lea.vmem [#allocation5], 16
    %v509 = vld [vmem:[%s508] sm:$0xf]
    %v510 = vld [vmem:[%s508 + $0x4] sm:$0xf]
    %v511 = vld [vmem:[%s508 + $0x8] sm:$0xf]
    %v512 = vld [vmem:[%s508 + $0xc] sm:$0xf]
    %s513 = scalar_lea.vmem %s8, 1
    %v514 = vld [vmem:[%s513] sm:$0x1]
    %v516 = vlaneseq
    %v517 = vshrl.u32 %v516, 7
    %v518 = vsub.s32 0, %v517
    %v519 = vrot.slane %v514, %v518
    %v525 = vunpack.c.l.b16 %v509
    %v526 = vunpack.c.l.b16 %v510
    %v527 = vunpack.c.l.b16 %v511
    %v528 = vunpack.c.l.b16 %v512
    %v529 = vpack.c.b16 %v526, %v525
    %v530 = vpack.c.b16 %v528, %v527
    %v534 = vsel %vm159, %v507, 0
    %536 = vmatprep.subr.bf16.mxu0 0
    %537 = vmatpush1.bf16.msra.mxu0 %v529
    %538 = vmatprep.subr.bf16.mxu0 0
    %539 = vmatpush1.bf16.msra.mxu0 %v530
    %540 = vmatprep.subr.bf16.mxu0 0
    %541 = vmatpush1.bf16.msra.mxu0 0
    %542 = vmatprep.subr.bf16.mxu0 0
    %543 = vmatpush1.bf16.msra.mxu0 0
    %544 = vmatprep.subr.bf16.mxu0 0
    %545 = vmatpush1.bf16.msra.mxu0 0
    %546 = vmatprep.subr.bf16.mxu0 0
    %547 = vmatpush1.bf16.msra.mxu0 0
    %548 = vmatprep.subr.bf16.mxu0 0
    %549 = vmatpush1.bf16.msra.mxu0 0
    %550 = vmatprep.subr.bf16.mxu0 0
    %551 = vmatpush1.bf16.msra.mxu0 0
    %552 = vmatprep.subr.bf16.mxu0 0
    %553 = vmatpush1.bf16.msra.mxu0 0
    %554 = vmatprep.subr.bf16.mxu0 0
    %555 = vmatpush1.bf16.msra.mxu0 0
    %556 = vmatprep.subr.bf16.mxu0 0
    %557 = vmatpush1.bf16.msra.mxu0 0
    %558 = vmatprep.subr.bf16.mxu0 0
    %559 = vmatpush1.bf16.msra.mxu0 0
    %560 = vmatprep.subr.bf16.mxu0 0
    %561 = vmatpush1.bf16.msra.mxu0 0
    %562 = vmatprep.subr.bf16.mxu0 0
    %563 = vmatpush1.bf16.msra.mxu0 0
    %564 = vmatprep.subr.bf16.mxu0 0
    %565 = vmatpush1.bf16.msra.mxu0 0
    %566 = vmatprep.subr.bf16.mxu0 0
    %567 = vmatpush1.bf16.msra.mxu0 0
    %568 = vmatprep.mubr.bf16.mxu0 0
    %569 = vmatmul.mubr.bf16.gmra.mrb[0].mxu0 %v534
    %v570 = vpop.f32.mrb[0].mxu0
    %v571 = vadd.f32 %v519, %v570
    %v572 = vpop.f32.mrb[0].mxu0
    %v573 = vpop.f32.mrb[0].mxu0
    %v574 = vpop.f32.mrb[0].mxu0
    %575 = vdwg.mxu0
    %v576 = vadd.f32 %v571, %v434
    %v577 = vmax.f32 %v576, 0.0
    %v578 = vpack.c.bf16 %v577, %v577
    %s579 = scalar_lea.vmem [#allocation5], 32
    %v580 = vld [vmem:[%s579] sm:$0xf]
    %v581 = vld [vmem:[%s579 + $0x4] sm:$0xf]
    %v582 = vld [vmem:[%s579 + $0x8] sm:$0xf]
    %v583 = vld [vmem:[%s579 + $0xc] sm:$0xf]
    %s584 = scalar_lea.vmem %s8, 2
    %v585 = vld [vmem:[%s584] sm:$0x1]
    %v587 = vlaneseq
    %v588 = vshrl.u32 %v587, 7
    %v589 = vsub.s32 0, %v588
    %v590 = vrot.slane %v585, %v589
    %v596 = vunpack.c.l.b16 %v580
    %v597 = vunpack.c.l.b16 %v581
    %v598 = vunpack.c.l.b16 %v582
    %v599 = vunpack.c.l.b16 %v583
    %v600 = vpack.c.b16 %v597, %v596
    %v601 = vpack.c.b16 %v599, %v598
    %v605 = vsel %vm159, %v578, 0
    %607 = vmatprep.subr.bf16.mxu0 0
    %608 = vmatpush1.bf16.msra.mxu0 %v600
    %609 = vmatprep.subr.bf16.mxu0 0
    %610 = vmatpush1.bf16.msra.mxu0 %v601
    %611 = vmatprep.subr.bf16.mxu0 0
    %612 = vmatpush1.bf16.msra.mxu0 0
    %613 = vmatprep.subr.bf16.mxu0 0
    %614 = vmatpush1.bf16.msra.mxu0 0
    %615 = vmatprep.subr.bf16.mxu0 0
    %616 = vmatpush1.bf16.msra.mxu0 0
    %617 = vmatprep.subr.bf16.mxu0 0
    %618 = vmatpush1.bf16.msra.mxu0 0
    %619 = vmatprep.subr.bf16.mxu0 0
    %620 = vmatpush1.bf16.msra.mxu0 0
    %621 = vmatprep.subr.bf16.mxu0 0
    %622 = vmatpush1.bf16.msra.mxu0 0
    %623 = vmatprep.subr.bf16.mxu0 0
    %624 = vmatpush1.bf16.msra.mxu0 0
    %625 = vmatprep.subr.bf16.mxu0 0
    %626 = vmatpush1.bf16.msra.mxu0 0
    %627 = vmatprep.subr.bf16.mxu0 0
    %628 = vmatpush1.bf16.msra.mxu0 0
    %629 = vmatprep.subr.bf16.mxu0 0
    %630 = vmatpush1.bf16.msra.mxu0 0
    %631 = vmatprep.subr.bf16.mxu0 0
    %632 = vmatpush1.bf16.msra.mxu0 0
    %633 = vmatprep.subr.bf16.mxu0 0
    %634 = vmatpush1.bf16.msra.mxu0 0
    %635 = vmatprep.subr.bf16.mxu0 0
    %636 = vmatpush1.bf16.msra.mxu0 0
    %637 = vmatprep.subr.bf16.mxu0 0
    %638 = vmatpush1.bf16.msra.mxu0 0
    %639 = vmatprep.mubr.bf16.mxu0 0
    %640 = vmatmul.mubr.bf16.gmra.mrb[0].mxu0 %v605
    %v641 = vpop.f32.mrb[0].mxu0
    %v642 = vadd.f32 %v590, %v641
    %v643 = vpop.f32.mrb[0].mxu0
    %v644 = vpop.f32.mrb[0].mxu0
    %v645 = vpop.f32.mrb[0].mxu0
    %646 = vdwg.mxu0
    %v647 = vmax.f32 %v642, 0.0
    %v648 = vpack.c.bf16 %v647, %v647
    %s649 = scalar_lea.vmem [#allocation5], 48
    %v650 = vld [vmem:[%s649] sm:$0xf]
    %v651 = vld [vmem:[%s649 + $0x4] sm:$0xf]
    %v652 = vld [vmem:[%s649 + $0x8] sm:$0xf]
    %v653 = vld [vmem:[%s649 + $0xc] sm:$0xf]
    %s654 = scalar_lea.vmem %s8, 3
    %v655 = vld [vmem:[%s654] sm:$0x1]
    %v657 = vlaneseq
    %v658 = vshrl.u32 %v657, 7
    %v659 = vsub.s32 0, %v658
    %v660 = vrot.slane %v655, %v659
    %v666 = vunpack.c.l.b16 %v650
    %v667 = vunpack.c.l.b16 %v651
    %v668 = vunpack.c.l.b16 %v652
    %v669 = vunpack.c.l.b16 %v653
    %v670 = vpack.c.b16 %v667, %v666
    %v671 = vpack.c.b16 %v669, %v668
    %v675 = vsel %vm159, %v648, 0
    %677 = vmatprep.subr.bf16.mxu0 0
    %678 = vmatpush1.bf16.msra.mxu0 %v670
    %679 = vmatprep.subr.bf16.mxu0 0
    %680 = vmatpush1.bf16.msra.mxu0 %v671
    %681 = vmatprep.subr.bf16.mxu0 0
    %682 = vmatpush1.bf16.msra.mxu0 0
    %683 = vmatprep.subr.bf16.mxu0 0
    %684 = vmatpush1.bf16.msra.mxu0 0
    %685 = vmatprep.subr.bf16.mxu0 0
    %686 = vmatpush1.bf16.msra.mxu0 0
    %687 = vmatprep.subr.bf16.mxu0 0
    %688 = vmatpush1.bf16.msra.mxu0 0
    %689 = vmatprep.subr.bf16.mxu0 0
    %690 = vmatpush1.bf16.msra.mxu0 0
    %691 = vmatprep.subr.bf16.mxu0 0
    %692 = vmatpush1.bf16.msra.mxu0 0
    %693 = vmatprep.subr.bf16.mxu0 0
    %694 = vmatpush1.bf16.msra.mxu0 0
    %695 = vmatprep.subr.bf16.mxu0 0
    %696 = vmatpush1.bf16.msra.mxu0 0
    %697 = vmatprep.subr.bf16.mxu0 0
    %698 = vmatpush1.bf16.msra.mxu0 0
    %699 = vmatprep.subr.bf16.mxu0 0
    %700 = vmatpush1.bf16.msra.mxu0 0
    %701 = vmatprep.subr.bf16.mxu0 0
    %702 = vmatpush1.bf16.msra.mxu0 0
    %703 = vmatprep.subr.bf16.mxu0 0
    %704 = vmatpush1.bf16.msra.mxu0 0
    %705 = vmatprep.subr.bf16.mxu0 0
    %706 = vmatpush1.bf16.msra.mxu0 0
    %707 = vmatprep.subr.bf16.mxu0 0
    %708 = vmatpush1.bf16.msra.mxu0 0
    %709 = vmatprep.mubr.bf16.mxu0 0
    %710 = vmatmul.mubr.bf16.gmra.mrb[0].mxu0 %v675
    %v711 = vpop.f32.mrb[0].mxu0
    %v712 = vadd.f32 %v660, %v711
    %v713 = vpop.f32.mrb[0].mxu0
    %v714 = vpop.f32.mrb[0].mxu0
    %v715 = vpop.f32.mrb[0].mxu0
    %716 = vdwg.mxu0
    %v717 = vadd.f32 %v712, %v577
    %v718 = vmax.f32 %v717, 0.0
    %v719 = vld [vmem:[%s9] sm:$0x1]
    %v721 = vlaneseq
    %v722 = vshrl.u32 %v721, 7
    %v723 = vsub.s32 0, %v722
    %v724 = vrot.slane %v719, %v723
    %v726 = vmul.f32 %v718, %v724
    %vm727 = vcmask 254976
    %v728 = vsel %vm727, %v726, 0.0
    %729 = vadd.xlane.f32.xlu0 %v728
    %v730 = vpop.xlane.xlu0 %729
    %v731 = vld [vmem:[#allocation2] sm:$0x1]
    %v733 = vlaneseq
    %v734 = vshrl.u32 %v733, 7
    %v735 = vsub.s32 0, %v734
    %v736 = vrot.slane %v731, %v735
    %v738 = vadd.f32 %v730, %v736
    %v739 = vxor.u32 %v738, 2147483648
    %v740 = vmul.f32 %v739, 1.442695
    %v741 = vpow.pop %v740
    %v742 = vadd.f32 %v741, 1.0
    %v743 = vrcp.pop %v742
    %v744 = vmul.f32 1.0, %v743
    %vm745 = vcmask 1024
    %746 = vst.msk [vmem:[%s11] sm:$0x3] %vm745, %v744
    // Predicated region
    $region54: #{tpu_custom_call.1} parent=1 // pred_check
      _
    $region55: #{tpu_custom_call.1} parent=1 // pred_check_branch
      %748 = sbr.rel (0) target = $region57
    $region56: #{tpu_custom_call.1} parent=1 // pred_region
      _
    $region57: #{tpu_custom_call.1} parent=1 // pred_fallthru
      _
    // Predicated region
    $region58: #{tpu_custom_call.1} parent=1 // pred_check
      _
    $region59: #{tpu_custom_call.1} parent=1 // pred_check_branch
      %750 = sbr.rel (0) target = $region61
    $region60: #{tpu_custom_call.1} parent=1 // pred_region
      _
    $region61: #{tpu_custom_call.1} parent=1 // pred_fallthru
      _
    %751 = vsyncpa [#allocation4], 1
    %752 = vsyncpa [#allocation6], 1

</llo_original>
